<compile_context>
chip_gen: v6e
topology: v6e:2x2x1
jax: 0.10.0
libtpu: 0.0.40
codegen_flags: <defaults>
</compile_context>

<pallas_src>
import jax
import jax.numpy as jnp
from jax.experimental import pallas as pl
from jax.experimental.pallas import tpu as pltpu

FEATURES = 1200
_MAX_TILE_ROWS = 1024        # 3 streams x 2 bufs x 1024 x 1280 x 4B ~= 31.5 MiB  (fits v7x 64 MiB)
_MIN_STEPS = 4               # >= 2 grid steps per v7x TensorCore: both cores busy + pipeline overlap
_MIN_TILE_ROWS = 128         # never shrink a step below this just to hit _MIN_STEPS
_SMALL_BATCH_THRESHOLD = 64  # below this, XLA elementwise fusion beats pallas_call fixed overhead


def _round_up(x, m):
    return ((x + m - 1) // m) * m


def _sublane_multiple(dtype):
    # Sub-32-bit dtypes pack along sublanes: 8 rows for f32, 16 for bf16, 32 for int8.
    return max(8, 32 // jnp.dtype(dtype).itemsize)


def _custom_layer_kernel(a_ref, t_ref, p_ref, o_ref):
    # a_ref, t_ref, o_ref: (TB, F) in the streamed dtype; p_ref: (2, F) f32 = [W; b].
    w = p_ref[0:1, :]        # static slices -> zero-cost ref views
    bias = p_ref[1:2, :]
    a = a_ref[...].astype(jnp.float32)   # no-op when inputs are already f32
    t = t_ref[...].astype(jnp.float32)
    # (1, F) broadcasts against (TB, F) along sublanes — pure VPU elementwise in f32;
    # cast on store only (keeps v5e, which has no bf16 VALU, correct and fast).
    o_ref[...] = (a - w * t + bias).astype(o_ref.dtype)


def _pick_tile_rows(batch, dtype):
    """Balanced, sublane-aligned batch tile."""
    sub = _sublane_multiple(dtype)
    num_tiles = pl.cdiv(batch, _MAX_TILE_ROWS)
    # Guarantee >= _MIN_STEPS grid steps (2 per v7x TensorCore) as long as each
    # step still carries at least _MIN_TILE_ROWS rows of real work.
    if batch >= _MIN_STEPS * _MIN_TILE_ROWS:
        num_tiles = max(num_tiles, _MIN_STEPS)
    tb = _round_up(pl.cdiv(batch, num_tiles), sub)
    if tb >= batch:
        # Full-extent block: always legal regardless of sublane multiple.
        return batch
    return tb


def _custom_layer_pallas(tensor_a, tensor_b, params):
    batch, feat = tensor_a.shape
    stream_dtype = tensor_a.dtype

    tb = _pick_tile_rows(batch, stream_dtype)
    grid = (pl.cdiv(batch, tb),)

    itemsize = jnp.dtype(stream_dtype).itemsize
    # VMEM accounting uses the lane-padded width actually occupied on-chip.
    feat_padded = 128 * pl.cdiv(feat, 128)
    tb_padded = _round_up(tb, _sublane_multiple(stream_dtype))
    tile_bytes = tb_padded * feat_padded * itemsize
    param_bytes = 8 * feat_padded * jnp.dtype(params.dtype).itemsize  # (2,F) pads to (8,1280)
    vmem_bytes = int(3 * 2 * tile_bytes + 2 * param_bytes) + (2 << 20)
    vmem_bytes = max(vmem_bytes, 16 << 20)

    # Bandwidth-bound hint for XLA's scheduler: 3 elementwise ops / element,
    # 3 streamed arrays (A read, B read, out write); params are negligible.
    cost = pl.CostEstimate(
        flops=3 * batch * feat,
        transcendentals=0,
        bytes_accessed=3 * batch * feat * itemsize,
    )

    return pl.pallas_call(
        _custom_layer_kernel,
        out_shape=jax.ShapeDtypeStruct((batch, feat), stream_dtype),
        grid_spec=pltpu.PrefetchScalarGridSpec(
            num_scalar_prefetch=0,
            grid=grid,
            in_specs=[
                pl.BlockSpec((tb, feat), lambda i: (i, 0)),   # TensorA (streamed)
                pl.BlockSpec((tb, feat), lambda i: (i, 0)),   # TensorB (streamed)
                pl.BlockSpec((2, feat), lambda i: (0, 0)),    # [W; b]  (VMEM-resident, f32)
            ],
            out_specs=pl.BlockSpec((tb, feat), lambda i: (i, 0)),
        ),
        compiler_params=pltpu.CompilerParams(
            dimension_semantics=("parallel",),
            vmem_limit_bytes=vmem_bytes,
        ),
        cost_estimate=cost,
    )(tensor_a, tensor_b, params)


def custom_layer(tensor_a, tensor_b, W, b, *, force_pallas=False):
    batch, feat = tensor_a.shape
    assert tensor_b.shape == (batch, feat)
    assert W.shape == (1, feat) and b.shape == (1, feat)

    if not force_pallas and batch < _SMALL_BATCH_THRESHOLD:
        # Tiny batch: total traffic is ~100 KB; pallas_call fixed overhead dominates.
        return (tensor_a.astype(jnp.float32) - W * tensor_b.astype(jnp.float32) + b).astype(
            tensor_a.dtype
        )

    # Params stay f32 regardless of the streamed dtype (compute is f32 in-kernel).
    # Tiny (2, feat) concat; negligible under jit — hoist if called in a hot non-jit loop.
    params = jnp.concatenate([W, b], axis=0).astype(jnp.float32)
    return _custom_layer_pallas(tensor_a, tensor_b, params)


if __name__ == "__main__":
    key = jax.random.PRNGKey(0)
    k_a, k_b, k_w, k_a2, k_b2 = jax.random.split(key, 5)

    # Deterministic parameter init matching nn.Parameter(torch.randn(1,1200)) / zeros.
    W = jax.random.normal(k_w, (1, FEATURES), dtype=jnp.float32)
    b = jnp.zeros((1, FEATURES), dtype=jnp.float32)

    # --- Small-shape check (forces the Pallas path so the kernel runs) ---
    batch = 8
    tensor_a = jax.random.normal(k_a, (batch, FEATURES), dtype=jnp.float32)
    tensor_b = jax.random.normal(k_b, (batch, FEATURES), dtype=jnp.float32)

    out = custom_layer(tensor_a, tensor_b, W, b, force_pallas=True)
    out = jax.block_until_ready(out)
    ref = tensor_a - W * tensor_b + b
    assert out.shape == (batch, FEATURES)
    assert jnp.allclose(out, ref, atol=1e-6, rtol=1e-6)

    # --- Balanced multi-tile path (batch=520 -> 4 tiles of 136 rows) ---
    batch2 = 520
    tensor_a2 = jax.random.normal(k_a2, (batch2, FEATURES), dtype=jnp.float32)
    tensor_b2 = jax.random.normal(k_b2, (batch2, FEATURES), dtype=jnp.float32)

    out2 = custom_layer(tensor_a2, tensor_b2, W, b)
    out2 = jax.block_until_ready(out2)
    ref2 = tensor_a2 - W * tensor_b2 + b
    assert out2.shape == (batch2, FEATURES)
    assert jnp.allclose(out2, ref2, atol=1e-6, rtol=1e-6)

    # --- bf16 streamed I/O path (f32 compute in-kernel, cast on store) ---
    a_bf = tensor_a2.astype(jnp.bfloat16)
    t_bf = tensor_b2.astype(jnp.bfloat16)
    out3 = custom_layer(a_bf, t_bf, W, b)
    out3 = jax.block_until_ready(out3)
    ref3 = (a_bf.astype(jnp.float32) - W * t_bf.astype(jnp.float32) + b).astype(jnp.bfloat16)
    assert out3.dtype == jnp.bfloat16 and out3.shape == (batch2, FEATURES)
    assert jnp.allclose(out3.astype(jnp.float32), ref3.astype(jnp.float32), atol=5e-2, rtol=5e-2)

    print("KERNEL_OK")
</pallas_src>

<mosaic_0001>
module attributes {stable_mosaic.version = 11 : i64} {
  func.func @_custom_layer_kernel(%arg0: i32, %arg1: memref<8x1200xf32, #tpu.memory_space<vmem>>, %arg2: memref<8x1200xf32, #tpu.memory_space<vmem>>, %arg3: memref<2x1200xf32, #tpu.memory_space<vmem>>, %arg4: memref<8x1200xf32, #tpu.memory_space<vmem>>) attributes {dimension_semantics = [#tpu.dimension_semantics<parallel>], iteration_bounds = array<i64: 1>, scalar_prefetch = 0 : i64, scratch_operands = 0 : i64, tpu.core_type = #tpu.core_type<tc>, window_params = [{transform_indices = @transform_0, window_bounds = array<i64: 8, 1200>}, {transform_indices = @transform_1, window_bounds = array<i64: 8, 1200>}, {pipeline_mode = #tpu.pipeline_mode<synchronous>, transform_indices = @transform_2, window_bounds = array<i64: 2, 1200>}, {transform_indices = @transform_3, window_bounds = array<i64: 8, 1200>}]} {
    %c0 = arith.constant 0 : index
    %c0_0 = arith.constant 0 : index
    %0 = vector.load %arg3[%c0, %c0_0] : memref<2x1200xf32, #tpu.memory_space<vmem>>, vector<1x1200xf32>
    %c1 = arith.constant 1 : index
    %c0_1 = arith.constant 0 : index
    %1 = vector.load %arg3[%c1, %c0_1] : memref<2x1200xf32, #tpu.memory_space<vmem>>, vector<1x1200xf32>
    %c0_2 = arith.constant 0 : index
    %c0_3 = arith.constant 0 : index
    %2 = vector.load %arg1[%c0_2, %c0_3] : memref<8x1200xf32, #tpu.memory_space<vmem>>, vector<8x1200xf32>
    %c0_4 = arith.constant 0 : index
    %c0_5 = arith.constant 0 : index
    %3 = vector.load %arg2[%c0_4, %c0_5] : memref<8x1200xf32, #tpu.memory_space<vmem>>, vector<8x1200xf32>
    %4 = vector.broadcast %0 : vector<1x1200xf32> to vector<8x1200xf32>
    %5 = arith.mulf %4, %3 : vector<8x1200xf32>
    %6 = arith.subf %2, %5 : vector<8x1200xf32>
    %7 = vector.broadcast %1 : vector<1x1200xf32> to vector<8x1200xf32>
    %8 = arith.addf %6, %7 : vector<8x1200xf32>
    %c0_6 = arith.constant 0 : index
    %c0_7 = arith.constant 0 : index
    %9 = vector.load %arg4[%c0_6, %c0_7] : memref<8x1200xf32, #tpu.memory_space<vmem>>, vector<8x1200xf32>
    tpu.vector_store %arg4[%c0_6, %c0_7], %8 {strides = array<i32>} : memref<8x1200xf32, #tpu.memory_space<vmem>>, vector<8x1200xf32>,
    return
  }
  func.func @transform_0(%arg0: i32) -> (i32, i32) {
    %c0_i32 = arith.constant 0 : i32
    %c0_i32_0 = arith.constant 0 : i32
    return %arg0, %c0_i32 : i32, i32
  }
  func.func @transform_1(%arg0: i32) -> (i32, i32) {
    %c0_i32 = arith.constant 0 : i32
    %c0_i32_0 = arith.constant 0 : i32
    return %arg0, %c0_i32 : i32, i32
  }
  func.func @transform_2(%arg0: i32) -> (i32, i32) {
    %c0_i32 = arith.constant 0 : i32
    %c0_i32_0 = arith.constant 0 : i32
    %c0_i32_1 = arith.constant 0 : i32
    return %c0_i32, %c0_i32_0 : i32, i32
  }
  func.func @transform_3(%arg0: i32) -> (i32, i32) {
    %c0_i32 = arith.constant 0 : i32
    %c0_i32_0 = arith.constant 0 : i32
    return %arg0, %c0_i32 : i32, i32
  }
}

</mosaic_0001>

<llo_original>
// kernel: tpu_custom_call.1
$region0: #{tpu_custom_call.1}
  #allocation0 [shape = 'u32[]', space=smem, size = 0x4, offset = 0x4, fixed_abs, tag = 'smem constant byte address 0x4 - core index']
  #allocation1 [shape = 'u32[144,128]{1,0:T(1,128)}', space=vmem, size = 0x12000, scoped, tag = 'internal scratch']
  %s0 = inlined_call_operand.hbm [shape: f32[8,1200], index: 0, kind: input, shape index: {}]
  %s1 = inlined_call_operand.hbm [shape: f32[8,1200], index: 1, kind: input, shape index: {}]
  %s2 = inlined_call_operand.hbm [shape: f32[2,1200], index: 2, kind: input, shape index: {}]
  %s3 = inlined_call_operand.hbm [shape: f32[8,1200], index: 3, kind: output, shape index: {}]
  %s4 = sld [smem:[#allocation0]]
  $region34: #{tpu_custom_call.1} parent=0
    _
  %s6 = ssub.s32 1, %s4
  %s7 = scalar_select 0, %s6, %s4
  $region1: #{tpu_custom_call.1} parent=0
    #allocation2 [shape = 'u8[40960]{0}', space=vmem, size = 0xa000, scoped, tag = 'input window, operand 0, single buffered']
    #allocation3 [shape = 's32[1]{0}', space=sflag, size = 0x4, scoped, tag = 'scoped memory for tpu_custom_call.1']
    #allocation4 [shape = 's32[1]{0}', space=sflag, size = 0x4, scoped, tag = 'scoped memory for tpu_custom_call.1']
    #allocation5 [shape = 'u8[40960]{0}', space=vmem, size = 0xa000, scoped, tag = 'input window, operand 1, single buffered']
    #allocation6 [shape = 's32[1]{0}', space=sflag, size = 0x4, scoped, tag = 'scoped memory for tpu_custom_call.1']
    #allocation7 [shape = 'u8[10240]{0}', space=vmem, size = 0x2800, scoped, tag = 'input window, operand 2, single buffered']
    #allocation8 [shape = 'u8[40960]{0}', space=vmem, size = 0xa000, scoped, tag = 'output window, operand 0, single buffered']
    %8 = vsyncpa [#allocation3], 0
    %9 = vsyncpa [#allocation6], 0
    %10 = vsyncpa [#allocation4], 0
    // Predicated region
    $region2: #{tpu_custom_call.1} parent=1 // pred_check
      _
    $region3: #{tpu_custom_call.1} parent=1 // pred_check_branch
      %12 = sbr.rel (0) target = $region5
    $region4: #{tpu_custom_call.1} parent=1 // pred_region
      %s14 = ssub.s32 1280, 1280
      %15 = vsyncadd [#allocation3], %s14
      %s17 = sshll.u32 [#allocation2], 4
      %s18 = int_to_ptr.vmem [resolvable:$true] %s17
      %20 = dma.hbm_to_vmem [thread:$0]  %s0, 1280, %s18, [#allocation3]
    $region5: #{tpu_custom_call.1} parent=1 // pred_fallthru
      _
    // Predicated region
    $region6: #{tpu_custom_call.1} parent=1 // pred_check
      _
    $region7: #{tpu_custom_call.1} parent=1 // pred_check_branch
      %22 = sbr.rel (0) target = $region9
    $region8: #{tpu_custom_call.1} parent=1 // pred_region
      %s24 = ssub.s32 1280, 1280
      %25 = vsyncadd [#allocation6], %s24
      %s27 = sshll.u32 [#allocation5], 4
      %s28 = int_to_ptr.vmem [resolvable:$true] %s27
      %30 = dma.hbm_to_vmem [thread:$0]  %s1, 1280, %s28, [#allocation6]
    $region9: #{tpu_custom_call.1} parent=1 // pred_fallthru
      _
    // Predicated region
    $region10: #{tpu_custom_call.1} parent=1 // pred_check
      _
    $region11: #{tpu_custom_call.1} parent=1 // pred_check_branch
      %32 = sbr.rel (0) target = $region13
    $region12: #{tpu_custom_call.1} parent=1 // pred_region
      %s34 = ssub.s32 320, 320
      %35 = vsyncadd [#allocation6], %s34
      %s37 = sshll.u32 [#allocation7], 4
      %s38 = int_to_ptr.vmem [resolvable:$true] %s37
      %40 = dma.hbm_to_vmem [thread:$0]  %s2, 320, %s38, [#allocation6]
    $region13: #{tpu_custom_call.1} parent=1 // pred_fallthru
      _
    // Predicated region
    $region14: #{tpu_custom_call.1} parent=1 // pred_check
      _
    $region15: #{tpu_custom_call.1} parent=1 // pred_check_branch
      %42 = sbr.rel (0) target = $region17
    $region16: #{tpu_custom_call.1} parent=1 // pred_region
      %43 = dma.done [#allocation3], 1280
    $region17: #{tpu_custom_call.1} parent=1 // pred_fallthru
      _
    // Predicated region
    $region18: #{tpu_custom_call.1} parent=1 // pred_check
      _
    $region19: #{tpu_custom_call.1} parent=1 // pred_check_branch
      %45 = sbr.rel (0) target = $region21
    $region20: #{tpu_custom_call.1} parent=1 // pred_region
      %46 = dma.done [#allocation6], 1280
    $region21: #{tpu_custom_call.1} parent=1 // pred_fallthru
      _
    // Predicated region
    $region22: #{tpu_custom_call.1} parent=1 // pred_check
      _
    $region23: #{tpu_custom_call.1} parent=1 // pred_check_branch
      %48 = sbr.rel (0) target = $region25
    $region24: #{tpu_custom_call.1} parent=1 // pred_region
      %49 = dma.done [#allocation6], 320
    $region25: #{tpu_custom_call.1} parent=1 // pred_fallthru
      _
    %v50 = vld [vmem:[#allocation7] ss:$2 sm:$0xff]
    %s51 = scalar_lea.vmem [#allocation7], 16
    %v52 = vld [vmem:[%s51] ss:$2 sm:$0x3]
    %s53 = scalar_lea.vmem [#allocation7], 1
    %v54 = vld [vmem:[%s53] ss:$2 sm:$0xff]
    %s55 = scalar_lea.vmem [#allocation7], 17
    %v56 = vld [vmem:[%s55] ss:$2 sm:$0x3]
    %v57 = vld [vmem:[#allocation2] sm:$0xff]
    %v58 = vld [vmem:[#allocation2 + $0x8] sm:$0xff]
    %v59 = vld [vmem:[#allocation2 + $0x10] sm:$0xff]
    %v60 = vld [vmem:[#allocation2 + $0x18] sm:$0xff]
    %v61 = vld [vmem:[#allocation2 + $0x20] sm:$0xff]
    %v62 = vld [vmem:[#allocation2 + $0x28] sm:$0xff]
    %v63 = vld [vmem:[#allocation2 + $0x30] sm:$0xff]
    %v64 = vld [vmem:[#allocation2 + $0x38] sm:$0xff]
    %v65 = vld [vmem:[#allocation2 + $0x40] sm:$0xff]
    %v66 = vld [vmem:[#allocation2 + $0x48] sm:$0xff]
    %v67 = vld [vmem:[#allocation5] sm:$0xff]
    %v68 = vld [vmem:[#allocation5 + $0x8] sm:$0xff]
    %v69 = vld [vmem:[#allocation5 + $0x10] sm:$0xff]
    %v70 = vld [vmem:[#allocation5 + $0x18] sm:$0xff]
    %v71 = vld [vmem:[#allocation5 + $0x20] sm:$0xff]
    %v72 = vld [vmem:[#allocation5 + $0x28] sm:$0xff]
    %v73 = vld [vmem:[#allocation5 + $0x30] sm:$0xff]
    %v74 = vld [vmem:[#allocation5 + $0x38] sm:$0xff]
    %v75 = vld [vmem:[#allocation5 + $0x40] sm:$0xff]
    %v76 = vld [vmem:[#allocation5 + $0x48] sm:$0xff]
    %v79 = vlaneseq
    %v80 = vshrl.u32 %v79, 7
    %v81 = vsub.s32 0, %v80
    %v82 = vrot.slane %v50, %v81
    %v83 = vlaneseq
    %v84 = vshrl.u32 %v83, 7
    %v85 = vsub.s32 1, %v84
    %v86 = vrot.slane %v50, %v85
    %v87 = vlaneseq
    %v88 = vshrl.u32 %v87, 7
    %v89 = vsub.s32 2, %v88
    %v90 = vrot.slane %v50, %v89
    %v91 = vlaneseq
    %v92 = vshrl.u32 %v91, 7
    %v93 = vsub.s32 3, %v92
    %v94 = vrot.slane %v50, %v93
    %v95 = vlaneseq
    %v96 = vshrl.u32 %v95, 7
    %v97 = vsub.s32 4, %v96
    %v98 = vrot.slane %v50, %v97
    %v99 = vlaneseq
    %v100 = vshrl.u32 %v99, 7
    %v101 = vsub.s32 5, %v100
    %v102 = vrot.slane %v50, %v101
    %v103 = vlaneseq
    %v104 = vshrl.u32 %v103, 7
    %v105 = vsub.s32 6, %v104
    %v106 = vrot.slane %v50, %v105
    %v107 = vlaneseq
    %v108 = vshrl.u32 %v107, 7
    %v109 = vsub.s32 7, %v108
    %v110 = vrot.slane %v50, %v109
    %v111 = vlaneseq
    %v112 = vshrl.u32 %v111, 7
    %v113 = vsub.s32 0, %v112
    %v114 = vrot.slane %v52, %v113
    %v115 = vlaneseq
    %v116 = vshrl.u32 %v115, 7
    %v117 = vsub.s32 1, %v116
    %v118 = vrot.slane %v52, %v117
    %v129 = vmul.f32 %v82, %v67
    %v130 = vmul.f32 %v86, %v68
    %v131 = vmul.f32 %v90, %v69
    %v132 = vmul.f32 %v94, %v70
    %v133 = vmul.f32 %v98, %v71
    %v134 = vmul.f32 %v102, %v72
    %v135 = vmul.f32 %v106, %v73
    %v136 = vmul.f32 %v110, %v74
    %v137 = vmul.f32 %v114, %v75
    %v138 = vmul.f32 %v118, %v76
    %v139 = vsub.f32 %v57, %v129
    %v140 = vsub.f32 %v58, %v130
    %v141 = vsub.f32 %v59, %v131
    %v142 = vsub.f32 %v60, %v132
    %v143 = vsub.f32 %v61, %v133
    %v144 = vsub.f32 %v62, %v134
    %v145 = vsub.f32 %v63, %v135
    %v146 = vsub.f32 %v64, %v136
    %v147 = vsub.f32 %v65, %v137
    %v148 = vsub.f32 %v66, %v138
    %v151 = vlaneseq
    %v152 = vshrl.u32 %v151, 7
    %v153 = vsub.s32 0, %v152
    %v154 = vrot.slane %v54, %v153
    %v155 = vlaneseq
    %v156 = vshrl.u32 %v155, 7
    %v157 = vsub.s32 1, %v156
    %v158 = vrot.slane %v54, %v157
    %v159 = vlaneseq
    %v160 = vshrl.u32 %v159, 7
    %v161 = vsub.s32 2, %v160
    %v162 = vrot.slane %v54, %v161
    %v163 = vlaneseq
    %v164 = vshrl.u32 %v163, 7
    %v165 = vsub.s32 3, %v164
    %v166 = vrot.slane %v54, %v165
    %v167 = vlaneseq
    %v168 = vshrl.u32 %v167, 7
    %v169 = vsub.s32 4, %v168
    %v170 = vrot.slane %v54, %v169
    %v171 = vlaneseq
    %v172 = vshrl.u32 %v171, 7
    %v173 = vsub.s32 5, %v172
    %v174 = vrot.slane %v54, %v173
    %v175 = vlaneseq
    %v176 = vshrl.u32 %v175, 7
    %v177 = vsub.s32 6, %v176
    %v178 = vrot.slane %v54, %v177
    %v179 = vlaneseq
    %v180 = vshrl.u32 %v179, 7
    %v181 = vsub.s32 7, %v180
    %v182 = vrot.slane %v54, %v181
    %v183 = vlaneseq
    %v184 = vshrl.u32 %v183, 7
    %v185 = vsub.s32 0, %v184
    %v186 = vrot.slane %v56, %v185
    %v187 = vlaneseq
    %v188 = vshrl.u32 %v187, 7
    %v189 = vsub.s32 1, %v188
    %v190 = vrot.slane %v56, %v189
    %v201 = vadd.f32 %v139, %v154
    %v202 = vadd.f32 %v140, %v158
    %v203 = vadd.f32 %v141, %v162
    %v204 = vadd.f32 %v142, %v166
    %v205 = vadd.f32 %v143, %v170
    %v206 = vadd.f32 %v144, %v174
    %v207 = vadd.f32 %v145, %v178
    %v208 = vadd.f32 %v146, %v182
    %v209 = vadd.f32 %v147, %v186
    %v210 = vadd.f32 %v148, %v190
    %211 = vst [vmem:[#allocation8] sm:$0xff] %v201
    %212 = vst [vmem:[#allocation8 + $0x8] sm:$0xff] %v202
    %213 = vst [vmem:[#allocation8 + $0x10] sm:$0xff] %v203
    %214 = vst [vmem:[#allocation8 + $0x18] sm:$0xff] %v204
    %215 = vst [vmem:[#allocation8 + $0x20] sm:$0xff] %v205
    %216 = vst [vmem:[#allocation8 + $0x28] sm:$0xff] %v206
    %217 = vst [vmem:[#allocation8 + $0x30] sm:$0xff] %v207
    %218 = vst [vmem:[#allocation8 + $0x38] sm:$0xff] %v208
    %219 = vst [vmem:[#allocation8 + $0x40] sm:$0xff] %v209
    %vm220 = vcmask 392192
    %221 = vst.msk [vmem:[#allocation8 + $0x48] sm:$0xff] %vm220, %v210
    // Predicated region
    $region26: #{tpu_custom_call.1} parent=1 // pred_check
      _
    $region27: #{tpu_custom_call.1} parent=1 // pred_check_branch
      %223 = sbr.rel (0) target = $region29
    $region28: #{tpu_custom_call.1} parent=1 // pred_region
      %s225 = ssub.s32 1280, 1280
      %226 = vsyncadd [#allocation4], %s225
      %s228 = sshll.u32 [#allocation8], 4
      %s229 = int_to_ptr.vmem [resolvable:$true] %s228
      %231 = dma.vmem_to_hbm [thread:$0]  %s229, 1280, %s3, [#allocation4]
    $region29: #{tpu_custom_call.1} parent=1 // pred_fallthru
      _
    // Predicated region
    $region30: #{tpu_custom_call.1} parent=1 // pred_check
      _
    $region31: #{tpu_custom_call.1} parent=1 // pred_check_branch
      %233 = sbr.rel (0) target = $region33
    $region32: #{tpu_custom_call.1} parent=1 // pred_region
      %234 = dma.done [#allocation4], 1280
    $region33: #{tpu_custom_call.1} parent=1 // pred_fallthru
      _
    %235 = vsyncpa [#allocation3], 1
    %236 = vsyncpa [#allocation6], 1
    %237 = vsyncpa [#allocation4], 1

</llo_original>
